<compile_context>
chip_gen: v6e
topology: v6e:2x2x1
jax: 0.10.0
libtpu: 0.0.40
codegen_flags: <defaults>
</compile_context>

<pallas_src>
import functools

import jax
import jax.numpy as jnp
from jax.experimental import pallas as pl
from jax.experimental.pallas import tpu as pltpu


def _round_up(x, m):
    return ((x + m - 1) // m) * m


# ----------------------------------------------------------------------------
# Kernel
# ----------------------------------------------------------------------------
def focal_kernel(nvalid_ref, logits_ref, tgt_ref, alpha_ref, out_ref, acc_ref, *,
                 gamma, tn, steps_per_core, num_blocks, eps):
    ci = pl.program_id(0)            # 2-way core split (parallel)
    si = pl.program_id(1)            # streaming step over column blocks (reduction)

    @pl.when(si == 0)
    def _():
        acc_ref[...] = jnp.zeros_like(acc_ref)

    # Linear column-block index handled at this (ci, si).  The index_map clamps it
    # to num_blocks-1, so "phantom" steps (odd block counts under the 2-way split)
    # re-read the last real block; the validity mask zeroes their contribution.
    lb = ci * steps_per_core + si
    lb_clamped = jnp.minimum(lb, num_blocks - 1)

    x = logits_ref[...].astype(jnp.float32)        # (C, TN)  classes on sublanes
    tgt = tgt_ref[...]                             # (1, TN)  int32
    alpha = alpha_ref[...].astype(jnp.float32)     # (C, 1)
    c, tn_ = x.shape

    n_valid = nvalid_ref[0]
    col = lb_clamped * tn + jax.lax.broadcasted_iota(jnp.int32, (1, tn_), 1)
    valid = jnp.logical_and(lb < num_blocks, col < n_valid)    # (1, TN) bool
    validf = valid.astype(jnp.float32)

    # Sanitize ragged-tail / phantom columns BEFORE exp so out-of-bounds garbage
    # cannot propagate NaN/Inf through exp/log.
    x = jnp.where(valid, x, 0.0)

    # One-hot mask over the class (sublane) axis.
    is_t = jax.lax.broadcasted_iota(jnp.int32, (c, tn_), 0) == tgt

    # Softmax prob of the target class, gathered without materializing full probs.
    m = jnp.max(x, axis=0, keepdims=True)                           # (1, TN)
    e = jnp.exp(x - m)                                              # (C, TN)
    sum_e = jnp.sum(e, axis=0, keepdims=True)                       # (1, TN)
    e_t = jnp.sum(jnp.where(is_t, e, 0.0), axis=0, keepdims=True)   # (1, TN)
    alpha_t = jnp.sum(jnp.where(is_t, alpha, 0.0), axis=0, keepdims=True)

    pt = e_t * pl.reciprocal(sum_e, approx=False)   # exact enough for 1e-5 tolerance
    log_pt = jnp.log(pt + eps)                      # matches torch.log(pt + 1e-9)
    omp = jnp.maximum(1.0 - pt, 0.0)                # clamp tiny negative bases

    # Integer gamma -> repeated multiplies (VALU) instead of pow (exp/log on EUP).
    if float(gamma).is_integer() and gamma >= 0:
        pow_term = jnp.ones_like(omp)
        for _ in range(int(gamma)):
            pow_term = pow_term * omp
    else:
        pow_term = omp ** gamma                     # fallback for non-integer gamma

    acc_ref[...] += validf * alpha_t * (-pow_term * log_pt)

    @pl.when(si == pl.num_programs(1) - 1)
    def _():
        total = jnp.sum(acc_ref[...], keepdims=True)            # (1, 1) partial sum
        out_ref[...] = jnp.broadcast_to(total, out_ref.shape)   # lane-dense store


# ----------------------------------------------------------------------------
# Wrapper
# ----------------------------------------------------------------------------
class FocalLossPallas:
    NUM_CORE_SPLITS = 2   # v7x has 2 TensorCores; harmless (sequential) on v5e/v6e

    def __init__(self, gamma=2, alpha=None, num_classes=5, block_n=32768,
                 vmem_limit_bytes=None):
        self.gamma = float(gamma)
        self.num_classes = int(num_classes)
        self.alpha = (jnp.ones((self.num_classes,), jnp.float32)
                      if alpha is None else jnp.asarray(alpha, jnp.float32))
        self.block_n = int(block_n)          # v5e: prefer <=16K or set vmem_limit_bytes
        self.vmem_limit_bytes = vmem_limit_bytes

    def __call__(self, inputs, targets):
        n, c = inputs.shape
        assert c == self.num_classes

        # Lane-dense layout: (C, N) logits, (1, N) targets.  No astype (bf16 streams
        # at half the HBM bytes; the kernel upcasts in-register) and no jnp.pad (the
        # ragged tail is masked in-kernel).
        # TODO(synk): have the producer emit (C, N) directly to drop this transpose pass.
        logits_t = jnp.transpose(inputs)
        tgt = targets.astype(jnp.int32).reshape(1, n)
        alpha2d = self.alpha.reshape(c, 1)

        tn = max(128, min(self.block_n, _round_up(n, 128)))   # lane tile, mult of 128
        num_blocks = -(-n // tn)
        ncores = self.NUM_CORE_SPLITS
        steps_per_core = -(-num_blocks // ncores)

        nvalid = jnp.array([n], dtype=jnp.int32)              # scalar-prefetch arg

        kernel = functools.partial(
            focal_kernel, gamma=self.gamma, tn=tn,
            steps_per_core=steps_per_core, num_blocks=num_blocks, eps=1e-9)

        def col_block(ci, si, nref):
            # Clamp so phantom steps stay in-bounds; kernel masks them to zero.
            return jnp.minimum(ci * steps_per_core + si, num_blocks - 1)

        cp_kwargs = dict(dimension_semantics=("parallel", "arbitrary"))
        if self.vmem_limit_bytes is not None:
            cp_kwargs["vmem_limit_bytes"] = int(self.vmem_limit_bytes)

        out = pl.pallas_call(
            kernel,
            out_shape=jax.ShapeDtypeStruct((1, ncores * 128), jnp.float32),
            grid_spec=pltpu.PrefetchScalarGridSpec(
                num_scalar_prefetch=1,
                grid=(ncores, steps_per_core),
                in_specs=[
                    pl.BlockSpec((c, tn),
                                 lambda ci, si, nref: (0, col_block(ci, si, nref))),
                    pl.BlockSpec((1, tn),
                                 lambda ci, si, nref: (0, col_block(ci, si, nref))),
                    pl.BlockSpec((c, 1), lambda ci, si, nref: (0, 0)),   # alpha, resident
                ],
                out_specs=pl.BlockSpec((1, 128), lambda ci, si, nref: (0, ci)),
                scratch_shapes=[pltpu.VMEM((1, tn), jnp.float32)],       # lane partials
            ),
            compiler_params=pltpu.CompilerParams(**cp_kwargs),
        )(nvalid, logits_t, tgt, alpha2d)

        # One partial sum per core at lane 0 of its 128-lane block; tiny XLA epilogue.
        return jnp.sum(out[0, 0::128]) / jnp.float32(n)


# ----------------------------------------------------------------------------
# Pure-JAX reference (mirrors the PyTorch module)
# ----------------------------------------------------------------------------
def _focal_ref(inputs, targets, alpha, gamma, num_classes):
    x = inputs.astype(jnp.float32)
    probs = jax.nn.softmax(x, axis=1)
    onehot = jax.nn.one_hot(targets, num_classes, dtype=jnp.float32)
    pt = jnp.sum(probs * onehot, axis=1)
    log_pt = jnp.log(pt + 1e-9)
    fl = -((1.0 - pt) ** gamma) * log_pt
    alpha_t = alpha[targets]
    return jnp.mean(alpha_t * fl)


# ----------------------------------------------------------------------------
if __name__ == "__main__":
    key = jax.random.PRNGKey(0)
    ok = True

    cases = [
        dict(n=8, c=5, gamma=2, alpha=None, dtype=jnp.float32, block_n=32768),
        dict(n=8, c=5, gamma=2,
             alpha=[0.25, 1.0, 2.0, 0.5, 1.5], dtype=jnp.float32, block_n=32768),
        # multi-block streaming + even 2-way core split + ragged tail (1000 % 256 != 0)
        dict(n=1000, c=5, gamma=3, alpha=None, dtype=jnp.float32, block_n=256),
        # odd block count -> one phantom (clamped, fully masked) step on the 2nd core
        dict(n=700, c=5, gamma=2, alpha=None, dtype=jnp.float32, block_n=256),
        # bf16 logits stream at half HBM bytes; kernel upcasts in-register
        dict(n=640, c=5, gamma=2, alpha=None, dtype=jnp.bfloat16, block_n=32768),
    ]

    for idx, case in enumerate(cases):
        k1, k2, key = jax.random.split(key, 3)
        logits = (jax.random.normal(k1, (case["n"], case["c"]), jnp.float32) * 3.0
                  ).astype(case["dtype"])
        tgts = jax.random.randint(k2, (case["n"],), 0, case["c"], dtype=jnp.int32)

        mod = FocalLossPallas(gamma=case["gamma"], alpha=case["alpha"],
                              num_classes=case["c"], block_n=case["block_n"])
        out = jax.block_until_ready(mod(logits, tgts))
        ref = _focal_ref(logits, tgts, mod.alpha, float(case["gamma"]), case["c"])

        if not bool(jnp.allclose(out, ref, rtol=1e-5, atol=1e-5)):
            ok = False
            print(f"MISMATCH case {idx}: pallas={out} ref={ref}")

    if ok:
        print("KERNEL_OK")
</pallas_src>

<mosaic_0001>
module attributes {stable_mosaic.version = 11 : i64} {
  func.func @focal_kernel(%arg0: i32, %arg1: i32, %arg2: memref<1xi32, #tpu.memory_space<smem>>, %arg3: memref<5x128xf32, #tpu.memory_space<vmem>>, %arg4: memref<1x128xi32, #tpu.memory_space<vmem>>, %arg5: memref<5x1xf32, #tpu.memory_space<vmem>>, %arg6: memref<1x128xf32, #tpu.memory_space<vmem>>, %arg7: memref<1x128xf32, #tpu.memory_space<vmem>>) attributes {dimension_semantics = [#tpu.dimension_semantics<parallel>, #tpu.dimension_semantics<arbitrary>], iteration_bounds = array<i64: 2, 1>, scalar_prefetch = 1 : i64, scratch_operands = 1 : i64, tpu.core_type = #tpu.core_type<tc>, window_params = [{transform_indices = @transform_0, window_bounds = array<i64: 5, 128>}, {transform_indices = @transform_1, window_bounds = array<i64: 1, 128>}, {pipeline_mode = #tpu.pipeline_mode<synchronous>, transform_indices = @transform_2, window_bounds = array<i64: 5, 1>}, {transform_indices = @transform_3, window_bounds = array<i64: 1, 128>}]} {
    %c0_i32 = arith.constant 0 : i32
    %0 = arith.cmpi eq, %arg1, %c0_i32 : i32
    %1 = arith.extui %0 : i1 to i32
    %c0_i32_0 = arith.constant 0 : i32
    %2 = arith.cmpi ne, %1, %c0_i32_0 : i32
    scf.if %2 {
      %cst_26 = arith.constant 0.000000e+00 : f32
      %68 = vector.broadcast %cst_26 : f32 to vector<1x128xf32>
      %c0_27 = arith.constant 0 : index
      %c0_28 = arith.constant 0 : index
      %69 = vector.load %arg7[%c0_27, %c0_28] : memref<1x128xf32, #tpu.memory_space<vmem>>, vector<1x128xf32>
      tpu.vector_store %arg7[%c0_27, %c0_28], %68 {strides = array<i32>} : memref<1x128xf32, #tpu.memory_space<vmem>>, vector<1x128xf32>,
    } else {
    }
    %c1_i32 = arith.constant 1 : i32
    %3 = arith.muli %arg0, %c1_i32 : i32
    %4 = arith.addi %3, %arg1 : i32
    %c0_i32_1 = arith.constant 0 : i32
    %5 = arith.minsi %4, %c0_i32_1 : i32
    %c0 = arith.constant 0 : index
    %c0_2 = arith.constant 0 : index
    %6 = vector.load %arg3[%c0, %c0_2] : memref<5x128xf32, #tpu.memory_space<vmem>>, vector<5x128xf32>
    %c0_3 = arith.constant 0 : index
    %c0_4 = arith.constant 0 : index
    %7 = vector.load %arg4[%c0_3, %c0_4] : memref<1x128xi32, #tpu.memory_space<vmem>>, vector<1x128xi32>
    %c0_5 = arith.constant 0 : index
    %c0_6 = arith.constant 0 : index
    %8 = vector.load %arg5[%c0_5, %c0_6] : memref<5x1xf32, #tpu.memory_space<vmem>>, vector<5x1xf32>
    %c0_7 = arith.constant 0 : index
    %9 = memref.load %arg2[%c0_7] : memref<1xi32, #tpu.memory_space<smem>>
    %c128_i32 = arith.constant 128 : i32
    %10 = arith.muli %5, %c128_i32 : i32
    %11 = tpu.iota {dimensions = array<i32: 1>} : vector<1x128xi32>
    %12 = vector.broadcast %10 : i32 to vector<1x128xi32>
    %13 = arith.addi %12, %11 : vector<1x128xi32>
    %c1_i32_8 = arith.constant 1 : i32
    %14 = arith.cmpi slt, %4, %c1_i32_8 : i32
    %15 = vector.broadcast %9 : i32 to vector<1x128xi32>
    %16 = arith.cmpi slt, %13, %15 : vector<1x128xi32>
    %17 = vector.broadcast %14 : i1 to vector<1x128xi1>
    %18 = arith.andi %17, %16 : vector<1x128xi1>
    %19 = arith.extui %18 : vector<1x128xi1> to vector<1x128xi32>
    %20 = arith.sitofp %19 : vector<1x128xi32> to vector<1x128xf32>
    %cst = arith.constant 0.000000e+00 : f32
    %21 = vector.shape_cast %18 : vector<1x128xi1> to vector<1x128xi1>
    %22 = vector.broadcast %21 : vector<1x128xi1> to vector<5x128xi1>
    %23 = vector.broadcast %cst : f32 to vector<5x128xf32>
    %24 = arith.select %22, %6, %23 : vector<5x128xi1>, vector<5x128xf32>
    %25 = tpu.iota {dimensions = array<i32: 0>} : vector<5x128xi32>
    %26 = vector.broadcast %7 : vector<1x128xi32> to vector<5x128xi32>
    %27 = arith.cmpi eq, %25, %26 : vector<5x128xi32>
    %cst_9 = arith.constant dense<0xFF800000> : vector<128xf32>
    %28 = vector.multi_reduction <maximumf>, %24, %cst_9 [0] : vector<5x128xf32> to vector<128xf32>
    %29 = vector.shape_cast %28 : vector<128xf32> to vector<1x128xf32>
    %30 = vector.broadcast %29 : vector<1x128xf32> to vector<5x128xf32>
    %31 = arith.subf %24, %30 : vector<5x128xf32>
    %32 = math.exp %31 : vector<5x128xf32>
    %cst_10 = arith.constant dense<0.000000e+00> : vector<128xf32>
    %33 = vector.multi_reduction <add>, %32, %cst_10 [0] : vector<5x128xf32> to vector<128xf32>
    %34 = vector.shape_cast %33 : vector<128xf32> to vector<1x128xf32>
    %cst_11 = arith.constant 0.000000e+00 : f32
    %35 = vector.broadcast %cst_11 : f32 to vector<5x128xf32>
    %36 = arith.select %27, %32, %35 : vector<5x128xi1>, vector<5x128xf32>
    %cst_12 = arith.constant dense<0.000000e+00> : vector<128xf32>
    %37 = vector.multi_reduction <add>, %36, %cst_12 [0] : vector<5x128xf32> to vector<128xf32>
    %38 = vector.shape_cast %37 : vector<128xf32> to vector<1x128xf32>
    %cst_13 = arith.constant 0.000000e+00 : f32
    %39 = vector.shape_cast %8 : vector<5x1xf32> to vector<5x1xf32>
    %40 = vector.broadcast %39 : vector<5x1xf32> to vector<5x128xf32>
    %41 = vector.broadcast %cst_13 : f32 to vector<5x128xf32>
    %42 = arith.select %27, %40, %41 : vector<5x128xi1>, vector<5x128xf32>
    %cst_14 = arith.constant dense<0.000000e+00> : vector<128xf32>
    %43 = vector.multi_reduction <add>, %42, %cst_14 [0] : vector<5x128xf32> to vector<128xf32>
    %44 = vector.shape_cast %43 : vector<128xf32> to vector<1x128xf32>
    %45 = tpu.reciprocal %34 : vector<1x128xf32> -> vector<1x128xf32>
    %46 = arith.mulf %38, %45 : vector<1x128xf32>
    %cst_15 = arith.constant 9.99999971E-10 : f32
    %47 = vector.broadcast %cst_15 : f32 to vector<1x128xf32>
    %48 = arith.addf %46, %47 : vector<1x128xf32>
    %49 = math.log %48 : vector<1x128xf32>
    %cst_16 = arith.constant 1.000000e+00 : f32
    %50 = vector.broadcast %cst_16 : f32 to vector<1x128xf32>
    %51 = arith.subf %50, %46 : vector<1x128xf32>
    %cst_17 = arith.constant 0.000000e+00 : f32
    %52 = vector.broadcast %cst_17 : f32 to vector<1x128xf32>
    %53 = arith.maximumf %51, %52 : vector<1x128xf32>
    %cst_18 = arith.constant 1.000000e+00 : f32
    %54 = vector.broadcast %cst_18 : f32 to vector<1x128xf32>
    %55 = arith.mulf %54, %53 : vector<1x128xf32>
    %56 = arith.mulf %55, %53 : vector<1x128xf32>
    %c0_19 = arith.constant 0 : index
    %c0_20 = arith.constant 0 : index
    %57 = vector.load %arg7[%c0_19, %c0_20] : memref<1x128xf32, #tpu.memory_space<vmem>>, vector<1x128xf32>
    %58 = arith.mulf %20, %44 : vector<1x128xf32>
    %cst_21 = arith.constant 0.000000e+00 : f32
    %59 = vector.broadcast %cst_21 : f32 to vector<1x128xf32>
    %60 = arith.subf %59, %56 : vector<1x128xf32>
    %61 = arith.mulf %60, %49 : vector<1x128xf32>
    %62 = arith.mulf %58, %61 : vector<1x128xf32>
    %63 = arith.addf %57, %62 : vector<1x128xf32>
    %c0_22 = arith.constant 0 : index
    %c0_23 = arith.constant 0 : index
    %64 = vector.load %arg7[%c0_22, %c0_23] : memref<1x128xf32, #tpu.memory_space<vmem>>, vector<1x128xf32>
    tpu.vector_store %arg7[%c0_22, %c0_23], %63 {strides = array<i32>} : memref<1x128xf32, #tpu.memory_space<vmem>>, vector<1x128xf32>,
    %c0_i32_24 = arith.constant 0 : i32
    %65 = arith.cmpi eq, %arg1, %c0_i32_24 : i32
    %66 = arith.extui %65 : i1 to i32
    %c0_i32_25 = arith.constant 0 : i32
    %67 = arith.cmpi ne, %66, %c0_i32_25 : i32
    scf.if %67 {
      %c0_26 = arith.constant 0 : index
      %c0_27 = arith.constant 0 : index
      %68 = vector.load %arg7[%c0_26, %c0_27] : memref<1x128xf32, #tpu.memory_space<vmem>>, vector<1x128xf32>
      %69 = vector.shape_cast %68 : vector<1x128xf32> to vector<1x1x128xf32>
      %cst_28 = arith.constant dense<0.000000e+00> : vector<1xf32>
      %70 = vector.multi_reduction <add>, %69, %cst_28 [1, 2] : vector<1x1x128xf32> to vector<1xf32>
      %71 = vector.shape_cast %70 : vector<1xf32> to vector<1x1x1xf32>
      %72 = vector.extract %71[0, 0, 0] : f32 from vector<1x1x1xf32>
      %73 = vector.broadcast %72 : f32 to vector<1x1xf32>
      %74 = vector.shape_cast %73 : vector<1x1xf32> to vector<1x1xf32>
      %75 = vector.broadcast %74 : vector<1x1xf32> to vector<1x128xf32>
      %c0_29 = arith.constant 0 : index
      %c0_30 = arith.constant 0 : index
      %76 = vector.load %arg6[%c0_29, %c0_30] : memref<1x128xf32, #tpu.memory_space<vmem>>, vector<1x128xf32>
      tpu.vector_store %arg6[%c0_29, %c0_30], %75 {strides = array<i32>} : memref<1x128xf32, #tpu.memory_space<vmem>>, vector<1x128xf32>,
    } else {
    }
    return
  }
  func.func @transform_0(%arg0: i32, %arg1: i32, %arg2: memref<1xi32, #tpu.memory_space<smem>>) -> (i32, i32) {
    %c1_i32 = arith.constant 1 : i32
    %0 = arith.muli %arg0, %c1_i32 : i32
    %1 = arith.addi %0, %arg1 : i32
    %c0_i32 = arith.constant 0 : i32
    %2 = arith.minsi %1, %c0_i32 : i32
    %c0_i32_0 = arith.constant 0 : i32
    %c0_i32_1 = arith.constant 0 : i32
    return %c0_i32_0, %2 : i32, i32
  }
  func.func @transform_1(%arg0: i32, %arg1: i32, %arg2: memref<1xi32, #tpu.memory_space<smem>>) -> (i32, i32) {
    %c1_i32 = arith.constant 1 : i32
    %0 = arith.muli %arg0, %c1_i32 : i32
    %1 = arith.addi %0, %arg1 : i32
    %c0_i32 = arith.constant 0 : i32
    %2 = arith.minsi %1, %c0_i32 : i32
    %c0_i32_0 = arith.constant 0 : i32
    %c0_i32_1 = arith.constant 0 : i32
    return %c0_i32_0, %2 : i32, i32
  }
  func.func @transform_2(%arg0: i32, %arg1: i32, %arg2: memref<1xi32, #tpu.memory_space<smem>>) -> (i32, i32) {
    %c0_i32 = arith.constant 0 : i32
    %c0_i32_0 = arith.constant 0 : i32
    %c0_i32_1 = arith.constant 0 : i32
    return %c0_i32, %c0_i32_0 : i32, i32
  }
  func.func @transform_3(%arg0: i32, %arg1: i32, %arg2: memref<1xi32, #tpu.memory_space<smem>>) -> (i32, i32) {
    %c0_i32 = arith.constant 0 : i32
    %c0_i32_0 = arith.constant 0 : i32
    return %c0_i32, %arg0 : i32, i32
  }
}

</mosaic_0001>

<llo_original>
// kernel: tpu_custom_call.1
$region0: #{tpu_custom_call.1}
  #allocation0 [shape = 'u32[]', space=smem, size = 0x4, offset = 0x4, fixed_abs, tag = 'smem constant byte address 0x4 - core index']
  #allocation1 [shape = 'u32[144,128]{1,0:T(1,128)}', space=vmem, size = 0x12000, scoped, tag = 'internal scratch']
  #allocation2 [shape = 'f32[1,128]{1,0:T(1,128)}', space=vmem, size = 0x200, scoped, tag = 'scratch operand']
  #allocation3 [shape = 's32[1]{0}', space=sflag, size = 0x4, scoped, tag = 'scoped memory for tpu_custom_call.1']
  #allocation4 [shape = 's32[1]{0:T(128)S(6)}', space=smem, size = 0x200, scoped, tag = 'prefetched SMEM operand 0']
  %s0 = inlined_call_operand.<no memory space> [shape: s32[1], index: 0, kind: input, shape index: {}]
  %s1 = inlined_call_operand.vmem [shape: f32[5,8], index: 1, kind: input, shape index: {}]
  %s2 = inlined_call_operand.vmem [shape: s32[1,8], index: 2, kind: input, shape index: {}]
  %s3 = inlined_call_operand.vmem [shape: f32[5,1], index: 3, kind: input, shape index: {}]
  %s4 = inlined_call_operand.hbm [shape: f32[1,256], index: 4, kind: output, shape index: {}]
  %s5 = sld [smem:[#allocation0]]
  $region53: #{tpu_custom_call.1} parent=0
    _
  %s7 = ssub.s32 1, %s5
  %s8 = scalar_select 0, %s7, %s5
  %9 = sst [smem:[#allocation4]] %s0
  $region1: #{tpu_custom_call.1} parent=0
    #allocation5 [shape = 'u8[1024]{0}', space=vmem, size = 0x400, scoped, tag = 'output window, operand 0']
    #allocation6 [shape = 's32[2]{0}', space=sflag, size = 0x8, scoped, tag = 'scoped memory for tpu_custom_call.1']
    %10 = vsyncpa [#allocation6], 0
    %s11 = scalar_lea.sflag [#allocation6], 1
    %12 = vsyncpa %s11, 0
    loop: start=0, step=1, limit=4
    $region2: #{tpu_custom_call.1} parent=1 // loop_pre_header
      _
    $region3: #{tpu_custom_call.1} parent=1 // loop_header
      %s14 = sphi 0, %s18
      %p15 = scmp.ge.s32.totalorder %s14, 4
      %s21 = sphi 0, %s33
      %s22 = sphi 0, %s29
      %s23 = sphi 0, %s21
      %s24 = sphi 0, %s22
      %s25 = sphi 0, %s23
      %s26 = sphi 0, %s24
      %s42 = sphi 0, %s44
      %s45 = sphi 0, %s42
      %s46 = sphi 0, %s45
      %s62 = sphi 0, %s46
      %s74 = sphi 0, %s76
      %s77 = sphi 0, %s74
      %s78 = sphi 0, %s77
      %s94 = sphi 0, %s78
      %s98 = sphi 0, %s98
      %s100 = sphi 0, %s98
      %s101 = sphi 0, %s100
      %s115 = sphi 0, %s101
      %s121 = sphi 0, %s123
      %s124 = sphi 0, %s121
      %s125 = sphi 0, %s124
      %s141 = sphi 0, %s125
    $region4: #{tpu_custom_call.1} parent=1 // loop_header_branch
      %17 = sbr.rel (%p15) target = $region8
    $region5: #{tpu_custom_call.1} parent=1 // loop_body
      %s19 = ssub.s32 %s14, 1
      %s20 = ssub.s32 %s14, 2
      %s27 = sadd.s32 1, %s22
      %p28 = scmp.ge.s32.totalorder %s27, 1
      %s29 = scalar_select %p28, 0, %s27
      %s30 = sadd.s32 1, %s21
      %s31 = scalar_select %p28, %s30, %s21
      %p32 = scmp.ge.s32.totalorder %s31, 2
      %s33 = scalar_select %p32, 0, %s31
      %s34 = sadd.s32 %s21, %s22
      %p35 = scmp.lt.s32.totalorder %s34, 0
      %s36 = scalar_select %p35, %s34, 0
      %s37 = sadd.s32 %s33, %s29
      %p38 = scmp.lt.s32.totalorder %s37, 0
      %s39 = scalar_select %p38, %s37, 0
      %s40 = ssub.s32 %s36, %s39
      %p41 = scmp.eq.s32.totalorder %s40, 0
      %s43 = sadd.s32 %s42, 1
      %s44 = scalar_select %p41, %s42, %s43
      %p47 = pneg %p41
      %p48 = scmp.eq.s32.totalorder %s14, 1
      %p49 = por %p47, %p48
      %p50 = scmp.ne.s32.totalorder %s42, %s45
      %p51 = scmp.eq.s32.totalorder %s14, 0
      %p52 = por %p50, %p51
      %p53 = scmp.ne.s32.totalorder %s42, %s45
      %p54 = scmp.eq.s32.totalorder %s19, 1
      %p55 = por %p53, %p54
      %p56 = scmp.ne.s32.totalorder %s45, %s46
      %p57 = scmp.eq.s32.totalorder %s19, 0
      %p58 = por %p56, %p57
      %p59 = scmp.ne.s32.totalorder %s45, %s46
      %p60 = scmp.eq.s32.totalorder %s20, 1
      %p61 = por %p59, %p60
      %p63 = scmp.ne.s32.totalorder %s46, %s62
      %p64 = scmp.eq.s32.totalorder %s20, 0
      %p65 = por %p63, %p64
      %s66 = sadd.s32 %s21, %s22
      %p67 = scmp.lt.s32.totalorder %s66, 0
      %s68 = scalar_select %p67, %s66, 0
      %s69 = sadd.s32 %s33, %s29
      %p70 = scmp.lt.s32.totalorder %s69, 0
      %s71 = scalar_select %p70, %s69, 0
      %s72 = ssub.s32 %s68, %s71
      %p73 = scmp.eq.s32.totalorder %s72, 0
      %s75 = sadd.s32 %s74, 1
      %s76 = scalar_select %p73, %s74, %s75
      %p79 = pneg %p73
      %p80 = scmp.eq.s32.totalorder %s14, 1
      %p81 = por %p79, %p80
      %p82 = scmp.ne.s32.totalorder %s74, %s77
      %p83 = scmp.eq.s32.totalorder %s14, 0
      %p84 = por %p82, %p83
      %p85 = scmp.ne.s32.totalorder %s74, %s77
      %p86 = scmp.eq.s32.totalorder %s19, 1
      %p87 = por %p85, %p86
      %p88 = scmp.ne.s32.totalorder %s77, %s78
      %p89 = scmp.eq.s32.totalorder %s19, 0
      %p90 = por %p88, %p89
      %p91 = scmp.ne.s32.totalorder %s77, %s78
      %p92 = scmp.eq.s32.totalorder %s20, 1
      %p93 = por %p91, %p92
      %p95 = scmp.ne.s32.totalorder %s78, %s94
      %p96 = scmp.eq.s32.totalorder %s20, 0
      %p97 = por %p95, %p96
      %s99 = sadd.s32 %s98, 1
      %p102 = scmp.eq.s32.totalorder %s14, 1
      %p103 = scmp.ne.s32.totalorder %s98, %s100
      %p104 = scmp.eq.s32.totalorder %s14, 0
      %p105 = por %p103, %p104
      %p106 = scmp.ne.s32.totalorder %s98, %s100
      %p107 = scmp.eq.s32.totalorder %s19, 1
      %p108 = por %p106, %p107
      %p109 = scmp.ne.s32.totalorder %s100, %s101
      %p110 = scmp.eq.s32.totalorder %s19, 0
      %p111 = por %p109, %p110
      %p112 = scmp.ne.s32.totalorder %s100, %s101
      %p113 = scmp.eq.s32.totalorder %s20, 1
      %p114 = por %p112, %p113
      %p116 = scmp.ne.s32.totalorder %s101, %s115
      %p117 = scmp.eq.s32.totalorder %s20, 0
      %p118 = por %p116, %p117
      %s119 = ssub.s32 %s21, %s33
      %p120 = scmp.eq.s32.totalorder %s119, 0
      %s122 = sadd.s32 %s121, 1
      %s123 = scalar_select %p120, %s121, %s122
      %p126 = pneg %p120
      %p127 = scmp.eq.s32.totalorder %s14, 1
      %p128 = por %p126, %p127
      %p129 = scmp.ne.s32.totalorder %s121, %s124
      %p130 = scmp.eq.s32.totalorder %s14, 0
      %p131 = por %p129, %p130
      %p132 = scmp.ne.s32.totalorder %s121, %s124
      %p133 = scmp.eq.s32.totalorder %s19, 1
      %p134 = por %p132, %p133
      %p135 = scmp.ne.s32.totalorder %s124, %s125
      %p136 = scmp.eq.s32.totalorder %s19, 0
      %p137 = por %p135, %p136
      %p138 = scmp.ne.s32.totalorder %s124, %s125
      %p139 = scmp.eq.s32.totalorder %s20, 1
      %p140 = por %p138, %p139
      %p142 = scmp.ne.s32.totalorder %s125, %s141
      %p143 = scmp.eq.s32.totalorder %s20, 0
      %p144 = por %p142, %p143
      %p145 = scmp.le.s32.totalorder 1, %s14
      %p146 = scmp.lt.s32.totalorder %s14, 3
      %p147 = pnand %p145, %p146
      %p148 = pneg %p147
      // Predicated region
      $region9: #{tpu_custom_call.1} parent=5 // pred_check
        _
      $region10: #{tpu_custom_call.1} parent=5 // pred_check_branch
        %150 = sbr.rel (%p147) target = $region12
      $region11: #{tpu_custom_call.1} parent=5 // pred_region
        %s151 = ssub.s32 %s14, 1
        // Predicated region
        $region13: #{tpu_custom_call.1} parent=11 // pred_check
          %p152 = pneg %p111
        $region14: #{tpu_custom_call.1} parent=11 // pred_check_branch
          %154 = sbr.rel (%p152) target = $region16
        $region15: #{tpu_custom_call.1} parent=11 // pred_region
          _
        $region16: #{tpu_custom_call.1} parent=11 // pred_fallthru
          _
      $region12: #{tpu_custom_call.1} parent=5 // pred_fallthru
        _
      %p155 = scmp.lt.s32.totalorder %s14, 2
      // Predicated region
      $region17: #{tpu_custom_call.1} parent=5 // pred_check
        %p156 = pneg %p155
      $region18: #{tpu_custom_call.1} parent=5 // pred_check_branch
        %158 = sbr.rel (%p156) target = $region20
      $region19: #{tpu_custom_call.1} parent=5 // pred_region
        // Predicated region
        $region21: #{tpu_custom_call.1} parent=19 // pred_check
          %p159 = pneg %p52
        $region22: #{tpu_custom_call.1} parent=19 // pred_check_branch
          %161 = sbr.rel (%p159) target = $region24
        $region23: #{tpu_custom_call.1} parent=19 // pred_region
          %s162 = sadd.s32 %s21, %s22
          %p163 = scmp.lt.s32.totalorder %s162, 0
          %s164 = scalar_select %p163, %s162, 0
          %p165 = scmp.lt.s32.totalorder %s164, 0
          %s166 = scalar_select %p165, %s164, 0
          %s167 = smul.addr %s166, 8
          %s168 = scalar_lea.vmem %s1, %s167
          %s169 = sadd.s32 %s21, %s22
          %p170 = scmp.lt.s32.totalorder %s169, 0
          %s171 = scalar_select %p170, %s169, 0
        $region24: #{tpu_custom_call.1} parent=19 // pred_fallthru
          _
        // Predicated region
        $region25: #{tpu_custom_call.1} parent=19 // pred_check
          %p172 = pneg %p84
        $region26: #{tpu_custom_call.1} parent=19 // pred_check_branch
          %174 = sbr.rel (%p172) target = $region28
        $region27: #{tpu_custom_call.1} parent=19 // pred_region
          %s175 = sadd.s32 %s21, %s22
          %p176 = scmp.lt.s32.totalorder %s175, 0
          %s177 = scalar_select %p176, %s175, 0
          %p178 = scmp.lt.s32.totalorder %s177, 0
          %s179 = scalar_select %p178, %s177, 0
          %s180 = scalar_lea.vmem %s2, %s179
          %s181 = sadd.s32 %s21, %s22
          %p182 = scmp.lt.s32.totalorder %s181, 0
          %s183 = scalar_select %p182, %s181, 0
        $region28: #{tpu_custom_call.1} parent=19 // pred_fallthru
          _
      $region20: #{tpu_custom_call.1} parent=5 // pred_fallthru
        _
      %p184 = scmp.le.s32.totalorder 1, %s14
      %p185 = scmp.lt.s32.totalorder %s14, 3
      %p186 = pnand %p184, %p185
      %p187 = pneg %p186
      // Predicated region
      $region29: #{tpu_custom_call.1} parent=5 // pred_check
        _
      $region30: #{tpu_custom_call.1} parent=5 // pred_check_branch
        %189 = sbr.rel (%p186) target = $region32
      $region31: #{tpu_custom_call.1} parent=5 // pred_region
        %s190 = ssub.s32 %s14, 1
        %s191 = sadd.s32 %s23, %s24
        %p192 = scmp.lt.s32.totalorder %s191, 0
        %s193 = scalar_select %p192, %s191, 0
        %p194 = scmp.lt.s32.totalorder %s193, 0
        %s195 = scalar_select %p194, %s193, 0
        %s196 = smul.addr %s195, 8
        %s197 = scalar_lea.vmem %s1, %s196
        %p198 = pneg %p58
        %p199 = pneg %p55
        %s200 = sadd.s32 %s23, %s24
        %p201 = scmp.lt.s32.totalorder %s200, 0
        %s202 = scalar_select %p201, %s200, 0
        %p203 = scmp.lt.s32.totalorder %s202, 0
        %s204 = scalar_select %p203, %s202, 0
        %s205 = scalar_lea.vmem %s2, %s204
        %p206 = pneg %p90
        %p207 = pneg %p87
        %p208 = pneg %p111
        %p209 = pneg %p108
        %p210 = pneg %p137
        %p211 = pneg %p134
        %s212 = sand.u32 %s124, 1
        %s213 = scalar_lea.sflag [#allocation6], %s212
        %s214 = sand.u32 %s124, 1
        %s215 = scalar_lea.vmem [#allocation5], %s214
        %s216 = sadd.s32 %s23, %s24
        %p217 = scmp.lt.s32.totalorder %s216, 0
        %s218 = scalar_select %p217, %s216, 0
        %p219 = scmp.lt.s32.totalorder %s218, 0
        %s220 = scalar_select %p219, %s218, 0
        %s221 = smul.addr %s220, 8
        %s222 = scalar_lea.vmem %s1, %s221
        %s223 = sadd.s32 %s23, %s24
        %p224 = scmp.lt.s32.totalorder %s223, 0
        %s225 = scalar_select %p224, %s223, 0
        %s226 = sadd.s32 %s23, %s24
        %p227 = scmp.lt.s32.totalorder %s226, 0
        %s228 = scalar_select %p227, %s226, 0
        %p229 = scmp.lt.s32.totalorder %s228, 0
        %s230 = scalar_select %p229, %s228, 0
        %s231 = scalar_lea.vmem %s2, %s230
        %s232 = sadd.s32 %s23, %s24
        %p233 = scmp.lt.s32.totalorder %s232, 0
        %s234 = scalar_select %p233, %s232, 0
        %p235 = scmp.eq.s32.totalorder %s24, 0
        // Predicated region
        $region33: #{tpu_custom_call.1} parent=31 // pred_check
          %p236 = pneg %p235
        $region34: #{tpu_custom_call.1} parent=31 // pred_check_branch
          %238 = sbr.rel (%p236) target = $region36
        $region35: #{tpu_custom_call.1} parent=31 // pred_region
          %239 = vst [vmem:[#allocation2] sm:$0x1] 0.0
        $region36: #{tpu_custom_call.1} parent=31 // pred_fallthru
          _
        %s240 = sadd.s32 %s23, %s24
        %p241 = scmp.lt.s32.totalorder %s240, 0
        %s242 = scalar_select %p241, %s240, 0
        %v243 = vld [vmem:[%s222] sm:$0x1f]
        %v244 = vld [vmem:[%s231] sm:$0x1]
        %v245 = vld [vmem:[%s3] sm:$0x1f]
        %s246 = sld [smem:[#allocation4]]
        %s247 = smul.u32 %s242, 128
        %v248 = vlaneseq
        %v249 = vand.u32 %v248, 127
        %v250 = vstv %s247
        %v251 = vadd.s32 %v250, %v249
        %p252 = scmp.lt.s32.totalorder %s240, 1
        %v253 = vstv %s246
        %vm254 = vcmp.lt.s32.totalorder %v251, %v253
        %s255 = scalar_select %p252, 1, 0
        %v256 = vstv %s255
        %vm257 = vcmp.eq.s32.totalorder %v256, 1
        %vm258 = vmand %vm257, %vm254
        %v259 = vsel %vm258, 1, 0
        %v260 = vcvt.s32.f32 %v259
        %vm261 = vcmp.eq.s32.totalorder %v259, 1
        %v262 = vsel %vm261, %v243, 0.0
        %v263 = vlaneseq
        %v264 = vshrl.u32 %v263, 7
        %v265 = vlaneseq
        %v266 = vshrl.u32 %v265, 7
        %v267 = vsub.s32 0, %v266
        %v268 = vrot.slane %v244, %v267
        %vm269 = vcmp.eq.s32.totalorder %v264, %v268
        %vm270 = vcmask 1044480
        %v271 = vsel %vm270, %v262, -inf
        %v272 = vrot.slane %v271, 4
        %v273 = vmax.f32 %v271, %v272
        %v274 = vrot.slane %v273, 2
        %v275 = vmax.f32 %v273, %v274
        %v276 = vrot.slane %v275, 1
        %v277 = vmax.f32 %v275, %v276
        %v278 = vsub.f32 %v262, %v277
        %v279 = vmul.f32 %v278, 1.442695
        %v280 = vpow.pop %v279
        %v281 = vsel %vm270, %v280, 0.0
        %v282 = vrot.slane %v281, 4
        %v283 = vadd.f32 %v281, %v282
        %v284 = vrot.slane %v283, 2
        %v285 = vadd.f32 %v283, %v284
        %v286 = vrot.slane %v285, 1
        %v287 = vadd.f32 %v285, %v286
        %v288 = vsel %vm269, %v280, 0.0
        %v289 = vsel %vm270, %v288, 0.0
        %v290 = vrot.slane %v289, 4
        %v291 = vadd.f32 %v289, %v290
        %v292 = vrot.slane %v291, 2
        %v293 = vadd.f32 %v291, %v292
        %v294 = vrot.slane %v293, 1
        %v295 = vadd.f32 %v293, %v294
        %297 = vset.pattern.permute.xlu0 0
        %298 = vperm.xlu0 %297, %v245
        %v299 = vpop.permute.xlu0 %298
        %v301 = vsel %vm269, %v299, 0.0
        %v302 = vsel %vm270, %v301, 0.0
        %v303 = vrot.slane %v302, 4
        %v304 = vadd.f32 %v302, %v303
        %v305 = vrot.slane %v304, 2
        %v306 = vadd.f32 %v304, %v305
        %v307 = vrot.slane %v306, 1
        %v308 = vadd.f32 %v306, %v307
        %v309 = vrcp.pop %v287
        %v310 = vmul.f32 %v295, %v309
        %v311 = vadd.f32 %v310, 1e-09
        %v312 = vlog2.pop %v311
        %v313 = vmul.f32 %v312, 0.6931472
        %v314 = vsub.f32 1.0, %v310
        %v315 = vmax.f32 %v314, 0.0
        %v316 = vmul.f32 %v315, %v315
        %v317 = vld [vmem:[#allocation2] sm:$0x1]
        %v318 = vmul.f32 %v260, %v308
        %v319 = vsub.f32 0.0, %v316
        %v320 = vmul.f32 %v319, %v313
        %v321 = vmul.f32 %v318, %v320
        %v322 = vadd.f32 %v317, %v321
        %323 = vst [vmem:[#allocation2] sm:$0x1] %v322
        // Predicated region
        $region37: #{tpu_custom_call.1} parent=31 // pred_check
          %p324 = pneg %p235
        $region38: #{tpu_custom_call.1} parent=31 // pred_check_branch
          %326 = sbr.rel (%p324) target = $region40
        $region39: #{tpu_custom_call.1} parent=31 // pred_region
          %v327 = vld [vmem:[#allocation2] sm:$0x1]
          %vm328 = vcmask 1040384
          %v329 = vsel %vm328, %v327, 0.0
          %330 = vadd.xlane.f32.xlu0 %v329
          %v331 = vpop.xlane.xlu0 %330
          %v332 = vrot.slane %v331, 4
          %v333 = vadd.f32 %v331, %v332
          %v334 = vrot.slane %v333, 2
          %v335 = vadd.f32 %v333, %v334
          %v336 = vrot.slane %v335, 1
          %v337 = vadd.f32 %v335, %v336
          %s338 = vtos %v337
          %v339 = vstv %s338
          %340 = vst [vmem:[%s215] sm:$0x1] %v339
        $region40: #{tpu_custom_call.1} parent=31 // pred_fallthru
          _
        %s341 = sand.u32 %s124, 1
        %s342 = scalar_lea.sflag [#allocation6], %s341
        %s343 = sand.u32 %s124, 1
        %s344 = scalar_lea.vmem [#allocation5], %s343
        // Predicated region
        $region41: #{tpu_custom_call.1} parent=31 // pred_check
          %p345 = pneg %p134
        $region42: #{tpu_custom_call.1} parent=31 // pred_check_branch
          %347 = sbr.rel (%p345) target = $region44
        $region43: #{tpu_custom_call.1} parent=31 // pred_region
          %s349 = ssub.s32 16, 16
          %350 = vsyncadd %s342, %s349
          %s351 = smul.addr %s23, 16
          %s352 = scalar_lea.hbm %s4, %s351
          %s354 = sshll.u32 %s344, 4
          %s355 = int_to_ptr.vmem [resolvable:$true] %s354
          %357 = dma.vmem_to_hbm [thread:$0]  %s355, 16, %s352, %s342
        $region44: #{tpu_custom_call.1} parent=31 // pred_fallthru
          _
      $region32: #{tpu_custom_call.1} parent=5 // pred_fallthru
        _
      %p358 = scmp.le.s32.totalorder 2, %s14
      // Predicated region
      $region45: #{tpu_custom_call.1} parent=5 // pred_check
        %p359 = pneg %p358
      $region46: #{tpu_custom_call.1} parent=5 // pred_check_branch
        %361 = sbr.rel (%p359) target = $region48
      $region47: #{tpu_custom_call.1} parent=5 // pred_region
        %s362 = ssub.s32 %s14, 2
        // Predicated region
        $region49: #{tpu_custom_call.1} parent=47 // pred_check
          %p363 = pneg %p140
        $region50: #{tpu_custom_call.1} parent=47 // pred_check_branch
          %365 = sbr.rel (%p363) target = $region52
        $region51: #{tpu_custom_call.1} parent=47 // pred_region
          %s366 = sand.u32 %s125, 1
          %s367 = scalar_lea.sflag [#allocation6], %s366
          %s368 = sand.u32 %s125, 1
          %s369 = scalar_lea.vmem [#allocation5], %s368
          %370 = dma.done %s367, 16
        $region52: #{tpu_custom_call.1} parent=47 // pred_fallthru
          _
      $region48: #{tpu_custom_call.1} parent=5 // pred_fallthru
        _
    $region6: #{tpu_custom_call.1} parent=1 // loop_footer
      %s18 = sadd.s32 1, %s14
    $region7: #{tpu_custom_call.1} parent=1 // loop_footer_branch
      %13 = sbr.rel target = $region3
    $region8: #{tpu_custom_call.1} parent=1 // loop_exit
      _
    %371 = vsyncpa [#allocation6], 1
    %s372 = scalar_lea.sflag [#allocation6], 1
    %373 = vsyncpa %s372, 1

</llo_original>
